<compile_context>
chip_gen: v7x
topology: tpu7x:2x2x1
jax: 0.10.0
libtpu: 0.0.40
codegen_flags: <defaults>
</compile_context>

<pallas_src>
import jax
import jax.numpy as jnp
from jax.experimental import pallas as pl
from jax.experimental.pallas import tpu as pltpu

IN_FEATURES = 30
NEURONS = 32           # `neurons` hyper-parameter of the module
DROP_P = 0.2
_KEEP_SCALE = 1.0 / (1.0 - DROP_P)
_DROP_THRESH = int(round(DROP_P * (1 << 32)))   # uint32 threshold: drop iff bits < thresh


def _mix_u32(x):
    """Murmur3-style 32-bit finalizer: good bit diffusion, VALU-only ops."""
    x = x ^ (x >> jnp.uint32(16))
    x = x * jnp.uint32(0x85EBCA6B)
    x = x ^ (x >> jnp.uint32(13))
    x = x * jnp.uint32(0xC2B2AE35)
    x = x ^ (x >> jnp.uint32(16))
    return x


def _dropout(h, row0_u32, seed_u32, salt):
    """Counter-based dropout: mask depends on (global row, col, seed, layer salt)."""
    b, n = h.shape
    row = jax.lax.broadcasted_iota(jnp.uint32, (b, n), 0) + row0_u32
    col = jax.lax.broadcasted_iota(jnp.uint32, (b, n), 1)
    ctr = row * jnp.uint32(n) + col
    bits = _mix_u32(ctr * jnp.uint32(0x9E3779B1) + seed_u32 + jnp.uint32(salt))
    keep = bits >= jnp.uint32(_DROP_THRESH)
    return jnp.where(keep, h * jnp.float32(_KEEP_SCALE), jnp.float32(0.0))


def net_kernel(seed_ref, x_ref, w1_ref, b1_ref, w2_ref, b2_ref, w3_ref, b3_ref, o_ref):
    seed = jax.lax.convert_element_type(seed_ref[0], jnp.uint32)
    # global row offset of this batch tile -> unique dropout mask per tile / per core
    row0 = jax.lax.convert_element_type(pl.program_id(0) * x_ref.shape[0], jnp.uint32)

    x = x_ref[...]                                                    # (TILE_B, 30)

    # fc1 + ReLU + dropout
    h = jnp.dot(x, w1_ref[...], preferred_element_type=jnp.float32) + b1_ref[...]
    h = jnp.maximum(h, 0.0)
    h = _dropout(h, row0, seed, salt=0x0001)

    # fc2 + ReLU + dropout
    h = jnp.dot(h, w2_ref[...], preferred_element_type=jnp.float32) + b2_ref[...]
    h = jnp.maximum(h, 0.0)
    h = _dropout(h, row0, seed, salt=0x0002)

    # fc3 + sigmoid
    z = jnp.dot(h, w3_ref[...], preferred_element_type=jnp.float32) + b3_ref[...]
    o_ref[...] = jax.nn.sigmoid(z)                                    # (TILE_B, 1)


def net_forward(x, params, seed=0, tile_b=2048):
    """Whole MLP forward in a single batch-tiled Pallas kernel (weights VMEM-resident)."""
    B, F = x.shape
    assert F == IN_FEATURES

    # batch tile: multiple of 8 (sublane), capped by padded batch and the requested size
    tile_b = int(min(tile_b, -(-B // 8) * 8))
    tile_b = max(8, (tile_b // 8) * 8)
    Bp = -(-B // tile_b) * tile_b
    if Bp != B:
        x = jnp.pad(x, ((0, Bp - B), (0, 0)))

    seed_arr = jnp.asarray([seed], dtype=jnp.int32)
    grid = (Bp // tile_b,)

    out = pl.pallas_call(
        net_kernel,
        out_shape=jax.ShapeDtypeStruct((Bp, 1), jnp.float32),
        grid_spec=pltpu.PrefetchScalarGridSpec(
            num_scalar_prefetch=1,           # seed lands in SMEM before the grid runs
            grid=grid,
            in_specs=[
                pl.BlockSpec((tile_b, IN_FEATURES), lambda i, seed: (i, 0)),   # x: tiled
                pl.BlockSpec((IN_FEATURES, NEURONS), lambda i, seed: (0, 0)),  # w1: resident
                pl.BlockSpec((1, NEURONS),           lambda i, seed: (0, 0)),  # b1
                pl.BlockSpec((NEURONS, NEURONS),     lambda i, seed: (0, 0)),  # w2
                pl.BlockSpec((1, NEURONS),           lambda i, seed: (0, 0)),  # b2
                pl.BlockSpec((NEURONS, 1),           lambda i, seed: (0, 0)),  # w3
                pl.BlockSpec((1, 1),                 lambda i, seed: (0, 0)),  # b3
            ],
            out_specs=pl.BlockSpec((tile_b, 1), lambda i, seed: (i, 0)),
        ),
        compiler_params=pltpu.CompilerParams(
            dimension_semantics=("parallel",)),      # megacore split on v7x
    )(seed_arr, x,
      params["w1"], params["b1"],
      params["w2"], params["b2"],
      params["w3"], params["b3"])

    return out[:B]


def init_params(key):
    """Deterministic init mimicking torch.nn.Linear (uniform(-1/sqrt(fan_in), 1/sqrt(fan_in))).
    Weights stored transposed: (in_features, out_features)."""
    def linear(key, fan_in, fan_out):
        kw, kb = jax.random.split(key)
        bound = 1.0 / jnp.sqrt(jnp.float32(fan_in))
        w = jax.random.uniform(kw, (fan_in, fan_out), jnp.float32, -bound, bound)
        b = jax.random.uniform(kb, (1, fan_out), jnp.float32, -bound, bound)
        return w, b

    k1, k2, k3 = jax.random.split(key, 3)
    w1, b1 = linear(k1, IN_FEATURES, NEURONS)
    w2, b2 = linear(k2, NEURONS, NEURONS)
    w3, b3 = linear(k3, NEURONS, 1)
    return {"w1": w1, "b1": b1, "w2": w2, "b2": b2, "w3": w3, "b3": b3}


if __name__ == "__main__":
    key = jax.random.PRNGKey(0)
    k_params, k_x = jax.random.split(key)

    params = init_params(k_params)
    batch = 8
    x = jax.random.normal(k_x, (batch, IN_FEATURES), dtype=jnp.float32)

    out = net_forward(x, params, seed=0)
    out = jax.block_until_ready(out)

    assert out.shape == (batch, 1)
    assert bool(jnp.all((out >= 0.0) & (out <= 1.0)))
    assert bool(jnp.all(jnp.isfinite(out)))
    print("KERNEL_OK")
</pallas_src>

<mosaic_0001>
module attributes {stable_mosaic.version = 11 : i64} {
  func.func @net_kernel(%arg0: i32, %arg1: memref<1xi32, #tpu.memory_space<smem>>, %arg2: memref<8x30xf32, #tpu.memory_space<vmem>>, %arg3: memref<30x32xf32, #tpu.memory_space<vmem>>, %arg4: memref<1x32xf32, #tpu.memory_space<vmem>>, %arg5: memref<32x32xf32, #tpu.memory_space<vmem>>, %arg6: memref<1x32xf32, #tpu.memory_space<vmem>>, %arg7: memref<32x1xf32, #tpu.memory_space<vmem>>, %arg8: memref<1x1xf32, #tpu.memory_space<vmem>>, %arg9: memref<8x1xf32, #tpu.memory_space<vmem>>) attributes {dimension_semantics = [#tpu.dimension_semantics<parallel>], iteration_bounds = array<i64: 1>, scalar_prefetch = 1 : i64, scratch_operands = 0 : i64, tpu.core_type = #tpu.core_type<tc>, window_params = [{transform_indices = @transform_0, window_bounds = array<i64: 8, 30>}, {pipeline_mode = #tpu.pipeline_mode<synchronous>, transform_indices = @transform_1, window_bounds = array<i64: 30, 32>}, {pipeline_mode = #tpu.pipeline_mode<synchronous>, transform_indices = @transform_2, window_bounds = array<i64: 1, 32>}, {pipeline_mode = #tpu.pipeline_mode<synchronous>, transform_indices = @transform_3, window_bounds = array<i64: 32, 32>}, {pipeline_mode = #tpu.pipeline_mode<synchronous>, transform_indices = @transform_4, window_bounds = array<i64: 1, 32>}, {pipeline_mode = #tpu.pipeline_mode<synchronous>, transform_indices = @transform_5, window_bounds = array<i64: 32, 1>}, {pipeline_mode = #tpu.pipeline_mode<synchronous>, transform_indices = @transform_6, window_bounds = array<i64: 1, 1>}, {transform_indices = @transform_7, window_bounds = array<i64: 8, 1>}]} {
    %c0 = arith.constant 0 : index
    %0 = memref.load %arg1[%c0] : memref<1xi32, #tpu.memory_space<smem>>
    %c8_i32 = arith.constant 8 : i32
    %1 = arith.muli %arg0, %c8_i32 : i32
    %c0_0 = arith.constant 0 : index
    %c0_1 = arith.constant 0 : index
    %2 = vector.load %arg2[%c0_0, %c0_1] : memref<8x30xf32, #tpu.memory_space<vmem>>, vector<8x30xf32>
    %c0_2 = arith.constant 0 : index
    %c0_3 = arith.constant 0 : index
    %3 = vector.load %arg3[%c0_2, %c0_3] : memref<30x32xf32, #tpu.memory_space<vmem>>, vector<30x32xf32>
    %cst = arith.constant dense<0.000000e+00> : vector<8x32xf32>
    %4 = tpu.matmul %2, %3, %cst {dimension_numbers = #tpu.dot_dimension_numbers<[1], [0], [0], [1], [0, 0, 1, 1], [], []>} : vector<8x30xf32>, vector<30x32xf32>, vector<8x32xf32> -> vector<8x32xf32>
    %c0_4 = arith.constant 0 : index
    %c0_5 = arith.constant 0 : index
    %5 = vector.load %arg4[%c0_4, %c0_5] : memref<1x32xf32, #tpu.memory_space<vmem>>, vector<1x32xf32>
    %6 = vector.broadcast %5 : vector<1x32xf32> to vector<8x32xf32>
    %7 = arith.addf %4, %6 : vector<8x32xf32>
    %cst_6 = arith.constant 0.000000e+00 : f32
    %8 = vector.broadcast %cst_6 : f32 to vector<8x32xf32>
    %9 = arith.maximumf %7, %8 : vector<8x32xf32>
    %10 = tpu.iota {dimensions = array<i32: 0>} : vector<8x32xi32>
    %11 = vector.broadcast %1 : i32 to vector<8x32xi32>
    %12 = arith.addi %10, %11 : vector<8x32xi32>
    %13 = tpu.iota {dimensions = array<i32: 1>} : vector<8x32xi32>
    %c32_i32 = arith.constant 32 : i32
    %14 = vector.broadcast %c32_i32 : i32 to vector<8x32xi32>
    %15 = arith.muli %12, %14 : vector<8x32xi32>
    %16 = arith.addi %15, %13 : vector<8x32xi32>
    %c-1640531535_i32 = arith.constant -1640531535 : i32
    %17 = vector.broadcast %c-1640531535_i32 : i32 to vector<8x32xi32>
    %18 = arith.muli %16, %17 : vector<8x32xi32>
    %19 = vector.broadcast %0 : i32 to vector<8x32xi32>
    %20 = arith.addi %18, %19 : vector<8x32xi32>
    %c1_i32 = arith.constant 1 : i32
    %21 = vector.broadcast %c1_i32 : i32 to vector<8x32xi32>
    %22 = arith.addi %20, %21 : vector<8x32xi32>
    %c16_i32 = arith.constant 16 : i32
    %23 = vector.broadcast %c16_i32 : i32 to vector<8x32xi32>
    %24 = arith.shrui %22, %23 : vector<8x32xi32>
    %25 = arith.xori %22, %24 : vector<8x32xi32>
    %c-2048144789_i32 = arith.constant -2048144789 : i32
    %26 = vector.broadcast %c-2048144789_i32 : i32 to vector<8x32xi32>
    %27 = arith.muli %25, %26 : vector<8x32xi32>
    %c13_i32 = arith.constant 13 : i32
    %28 = vector.broadcast %c13_i32 : i32 to vector<8x32xi32>
    %29 = arith.shrui %27, %28 : vector<8x32xi32>
    %30 = arith.xori %27, %29 : vector<8x32xi32>
    %c-1028477387_i32 = arith.constant -1028477387 : i32
    %31 = vector.broadcast %c-1028477387_i32 : i32 to vector<8x32xi32>
    %32 = arith.muli %30, %31 : vector<8x32xi32>
    %c16_i32_7 = arith.constant 16 : i32
    %33 = vector.broadcast %c16_i32_7 : i32 to vector<8x32xi32>
    %34 = arith.shrui %32, %33 : vector<8x32xi32>
    %35 = arith.xori %32, %34 : vector<8x32xi32>
    %c858993459_i32 = arith.constant 858993459 : i32
    %36 = vector.broadcast %c858993459_i32 : i32 to vector<8x32xi32>
    %37 = arith.cmpi uge, %35, %36 : vector<8x32xi32>
    %cst_8 = arith.constant 1.250000e+00 : f32
    %38 = vector.broadcast %cst_8 : f32 to vector<8x32xf32>
    %39 = arith.mulf %9, %38 : vector<8x32xf32>
    %cst_9 = arith.constant 0.000000e+00 : f32
    %40 = vector.broadcast %cst_9 : f32 to vector<8x32xf32>
    %41 = arith.select %37, %39, %40 : vector<8x32xi1>, vector<8x32xf32>
    %c0_10 = arith.constant 0 : index
    %c0_11 = arith.constant 0 : index
    %42 = vector.load %arg5[%c0_10, %c0_11] : memref<32x32xf32, #tpu.memory_space<vmem>>, vector<32x32xf32>
    %cst_12 = arith.constant dense<0.000000e+00> : vector<8x32xf32>
    %43 = tpu.matmul %41, %42, %cst_12 {dimension_numbers = #tpu.dot_dimension_numbers<[1], [0], [0], [1], [0, 0, 1, 1], [], []>} : vector<8x32xf32>, vector<32x32xf32>, vector<8x32xf32> -> vector<8x32xf32>
    %c0_13 = arith.constant 0 : index
    %c0_14 = arith.constant 0 : index
    %44 = vector.load %arg6[%c0_13, %c0_14] : memref<1x32xf32, #tpu.memory_space<vmem>>, vector<1x32xf32>
    %45 = vector.broadcast %44 : vector<1x32xf32> to vector<8x32xf32>
    %46 = arith.addf %43, %45 : vector<8x32xf32>
    %cst_15 = arith.constant 0.000000e+00 : f32
    %47 = vector.broadcast %cst_15 : f32 to vector<8x32xf32>
    %48 = arith.maximumf %46, %47 : vector<8x32xf32>
    %49 = tpu.iota {dimensions = array<i32: 0>} : vector<8x32xi32>
    %50 = vector.broadcast %1 : i32 to vector<8x32xi32>
    %51 = arith.addi %49, %50 : vector<8x32xi32>
    %52 = tpu.iota {dimensions = array<i32: 1>} : vector<8x32xi32>
    %c32_i32_16 = arith.constant 32 : i32
    %53 = vector.broadcast %c32_i32_16 : i32 to vector<8x32xi32>
    %54 = arith.muli %51, %53 : vector<8x32xi32>
    %55 = arith.addi %54, %52 : vector<8x32xi32>
    %c-1640531535_i32_17 = arith.constant -1640531535 : i32
    %56 = vector.broadcast %c-1640531535_i32_17 : i32 to vector<8x32xi32>
    %57 = arith.muli %55, %56 : vector<8x32xi32>
    %58 = vector.broadcast %0 : i32 to vector<8x32xi32>
    %59 = arith.addi %57, %58 : vector<8x32xi32>
    %c2_i32 = arith.constant 2 : i32
    %60 = vector.broadcast %c2_i32 : i32 to vector<8x32xi32>
    %61 = arith.addi %59, %60 : vector<8x32xi32>
    %c16_i32_18 = arith.constant 16 : i32
    %62 = vector.broadcast %c16_i32_18 : i32 to vector<8x32xi32>
    %63 = arith.shrui %61, %62 : vector<8x32xi32>
    %64 = arith.xori %61, %63 : vector<8x32xi32>
    %c-2048144789_i32_19 = arith.constant -2048144789 : i32
    %65 = vector.broadcast %c-2048144789_i32_19 : i32 to vector<8x32xi32>
    %66 = arith.muli %64, %65 : vector<8x32xi32>
    %c13_i32_20 = arith.constant 13 : i32
    %67 = vector.broadcast %c13_i32_20 : i32 to vector<8x32xi32>
    %68 = arith.shrui %66, %67 : vector<8x32xi32>
    %69 = arith.xori %66, %68 : vector<8x32xi32>
    %c-1028477387_i32_21 = arith.constant -1028477387 : i32
    %70 = vector.broadcast %c-1028477387_i32_21 : i32 to vector<8x32xi32>
    %71 = arith.muli %69, %70 : vector<8x32xi32>
    %c16_i32_22 = arith.constant 16 : i32
    %72 = vector.broadcast %c16_i32_22 : i32 to vector<8x32xi32>
    %73 = arith.shrui %71, %72 : vector<8x32xi32>
    %74 = arith.xori %71, %73 : vector<8x32xi32>
    %c858993459_i32_23 = arith.constant 858993459 : i32
    %75 = vector.broadcast %c858993459_i32_23 : i32 to vector<8x32xi32>
    %76 = arith.cmpi uge, %74, %75 : vector<8x32xi32>
    %cst_24 = arith.constant 1.250000e+00 : f32
    %77 = vector.broadcast %cst_24 : f32 to vector<8x32xf32>
    %78 = arith.mulf %48, %77 : vector<8x32xf32>
    %cst_25 = arith.constant 0.000000e+00 : f32
    %79 = vector.broadcast %cst_25 : f32 to vector<8x32xf32>
    %80 = arith.select %76, %78, %79 : vector<8x32xi1>, vector<8x32xf32>
    %c0_26 = arith.constant 0 : index
    %c0_27 = arith.constant 0 : index
    %81 = vector.load %arg7[%c0_26, %c0_27] : memref<32x1xf32, #tpu.memory_space<vmem>>, vector<32x1xf32>
    %cst_28 = arith.constant dense<0.000000e+00> : vector<8x1xf32>
    %82 = tpu.matmul %80, %81, %cst_28 {dimension_numbers = #tpu.dot_dimension_numbers<[1], [0], [0], [1], [0, 0, 1, 1], [], []>} : vector<8x32xf32>, vector<32x1xf32>, vector<8x1xf32> -> vector<8x1xf32>
    %c0_29 = arith.constant 0 : index
    %c0_30 = arith.constant 0 : index
    %83 = vector.load %arg8[%c0_29, %c0_30] : memref<1x1xf32, #tpu.memory_space<vmem>>, vector<1x1xf32>
    %84 = vector.broadcast %83 : vector<1x1xf32> to vector<8x1xf32>
    %85 = arith.addf %82, %84 : vector<8x1xf32>
    %86 = arith.negf %85 : vector<8x1xf32>
    %87 = math.exp %86 : vector<8x1xf32>
    %cst_31 = arith.constant 1.000000e+00 : f32
    %88 = vector.broadcast %cst_31 : f32 to vector<8x1xf32>
    %89 = arith.addf %88, %87 : vector<8x1xf32>
    %90 = arith.divf %88, %89 : vector<8x1xf32>
    %c0_32 = arith.constant 0 : index
    %c0_33 = arith.constant 0 : index
    %91 = vector.load %arg9[%c0_32, %c0_33] : memref<8x1xf32, #tpu.memory_space<vmem>>, vector<8x1xf32>
    tpu.vector_store %arg9[%c0_32, %c0_33], %90 {strides = array<i32>} : memref<8x1xf32, #tpu.memory_space<vmem>>, vector<8x1xf32>,
    return
  }
  func.func @transform_0(%arg0: i32, %arg1: memref<1xi32, #tpu.memory_space<smem>>) -> (i32, i32) {
    %c0_i32 = arith.constant 0 : i32
    %c0_i32_0 = arith.constant 0 : i32
    return %arg0, %c0_i32 : i32, i32
  }
  func.func @transform_1(%arg0: i32, %arg1: memref<1xi32, #tpu.memory_space<smem>>) -> (i32, i32) {
    %c0_i32 = arith.constant 0 : i32
    %c0_i32_0 = arith.constant 0 : i32
    %c0_i32_1 = arith.constant 0 : i32
    return %c0_i32, %c0_i32_0 : i32, i32
  }
  func.func @transform_2(%arg0: i32, %arg1: memref<1xi32, #tpu.memory_space<smem>>) -> (i32, i32) {
    %c0_i32 = arith.constant 0 : i32
    %c0_i32_0 = arith.constant 0 : i32
    %c0_i32_1 = arith.constant 0 : i32
    return %c0_i32, %c0_i32_0 : i32, i32
  }
  func.func @transform_3(%arg0: i32, %arg1: memref<1xi32, #tpu.memory_space<smem>>) -> (i32, i32) {
    %c0_i32 = arith.constant 0 : i32
    %c0_i32_0 = arith.constant 0 : i32
    %c0_i32_1 = arith.constant 0 : i32
    return %c0_i32, %c0_i32_0 : i32, i32
  }
  func.func @transform_4(%arg0: i32, %arg1: memref<1xi32, #tpu.memory_space<smem>>) -> (i32, i32) {
    %c0_i32 = arith.constant 0 : i32
    %c0_i32_0 = arith.constant 0 : i32
    %c0_i32_1 = arith.constant 0 : i32
    return %c0_i32, %c0_i32_0 : i32, i32
  }
  func.func @transform_5(%arg0: i32, %arg1: memref<1xi32, #tpu.memory_space<smem>>) -> (i32, i32) {
    %c0_i32 = arith.constant 0 : i32
    %c0_i32_0 = arith.constant 0 : i32
    %c0_i32_1 = arith.constant 0 : i32
    return %c0_i32, %c0_i32_0 : i32, i32
  }
  func.func @transform_6(%arg0: i32, %arg1: memref<1xi32, #tpu.memory_space<smem>>) -> (i32, i32) {
    %c0_i32 = arith.constant 0 : i32
    %c0_i32_0 = arith.constant 0 : i32
    %c0_i32_1 = arith.constant 0 : i32
    return %c0_i32, %c0_i32_0 : i32, i32
  }
  func.func @transform_7(%arg0: i32, %arg1: memref<1xi32, #tpu.memory_space<smem>>) -> (i32, i32) {
    %c0_i32 = arith.constant 0 : i32
    %c0_i32_0 = arith.constant 0 : i32
    return %arg0, %c0_i32 : i32, i32
  }
}

</mosaic_0001>

<llo_original>
// kernel: tpu_custom_call.1
$region0: #{tpu_custom_call.1}
  #allocation0 [shape = 'u32[]', space=smem, size = 0x4, offset = 0x4, fixed_abs, tag = 'smem constant byte address 0x4 - core index']
  #allocation1 [shape = 'u32[144,128]{1,0:T(1,128)}', space=vmem, size = 0x12000, scoped, tag = 'internal scratch']
  #allocation2 [shape = 's32[1]{0}', space=sflag, size = 0x4, scoped, tag = 'scoped memory for tpu_custom_call.1']
  #allocation3 [shape = 's32[1]{0:T(128)S(6)}', space=smem, size = 0x200, scoped, tag = 'prefetched SMEM operand 0']
  #allocation4 [shape = 'f32[1,1]{1,0:T(1,128)S(1)}', space=vmem, size = 0x200, scoped, tag = 'scoped memory for tpu_custom_call.1']
  %s0 = inlined_call_operand.<no memory space> [shape: s32[1], index: 0, kind: input, shape index: {}]
  %s1 = inlined_call_operand.vmem [shape: f32[8,30], index: 1, kind: input, shape index: {}]
  %s2 = inlined_call_operand.vmem [shape: f32[30,32], index: 2, kind: input, shape index: {}]
  %s3 = inlined_call_operand.vmem [shape: f32[1,32], index: 3, kind: input, shape index: {}]
  %s4 = inlined_call_operand.hbm [shape: f32[32,32], index: 4, kind: input, shape index: {}]
  %s5 = inlined_call_operand.vmem [shape: f32[1,32], index: 5, kind: input, shape index: {}]
  %s6 = inlined_call_operand.vmem [shape: f32[32,1], index: 6, kind: input, shape index: {}]
  %s7 = inlined_call_operand.<no memory space> [shape: f32[1,1], index: 7, kind: input, shape index: {}]
  %s8 = inlined_call_operand.vmem [shape: f32[8,1], index: 8, kind: output, shape index: {}]
  %s9 = sld [smem:[#allocation0]]
  $region42: #{tpu_custom_call.1} parent=0
    _
  %s11 = ssub.s32 1, %s9
  %s12 = scalar_select 0, %s11, %s9
  %13 = sst [smem:[#allocation3]] %s0
  %v14 = vstv %s7
  %15 = vst [vmem:[#allocation4] sm:$0x1] %v14
  $region1: #{tpu_custom_call.1} parent=0
    #allocation5 [shape = 'u8[16384]{0}', space=vmem, size = 0x4000, scoped, tag = 'input window, operand 4, single buffered']
    #allocation6 [shape = 's32[1]{0}', space=sflag, size = 0x4, scoped, tag = 'scoped memory for tpu_custom_call.1']
    %16 = vsyncpa [#allocation6], 0
    // Predicated region
    $region2: #{tpu_custom_call.1} parent=1 // pred_check
      _
    $region3: #{tpu_custom_call.1} parent=1 // pred_check_branch
      %18 = sbr.rel (0) target = $region5
    $region4: #{tpu_custom_call.1} parent=1 // pred_region
      _
    $region5: #{tpu_custom_call.1} parent=1 // pred_fallthru
      _
    // Predicated region
    $region6: #{tpu_custom_call.1} parent=1 // pred_check
      _
    $region7: #{tpu_custom_call.1} parent=1 // pred_check_branch
      %20 = sbr.rel (0) target = $region9
    $region8: #{tpu_custom_call.1} parent=1 // pred_region
      _
    $region9: #{tpu_custom_call.1} parent=1 // pred_fallthru
      _
    // Predicated region
    $region10: #{tpu_custom_call.1} parent=1 // pred_check
      _
    $region11: #{tpu_custom_call.1} parent=1 // pred_check_branch
      %22 = sbr.rel (0) target = $region13
    $region12: #{tpu_custom_call.1} parent=1 // pred_region
      _
    $region13: #{tpu_custom_call.1} parent=1 // pred_fallthru
      _
    // Predicated region
    $region14: #{tpu_custom_call.1} parent=1 // pred_check
      _
    $region15: #{tpu_custom_call.1} parent=1 // pred_check_branch
      %24 = sbr.rel (0) target = $region17
    $region16: #{tpu_custom_call.1} parent=1 // pred_region
      %s26 = ssub.s32 512, 512
      %27 = vsyncadd [#allocation6], %s26
      %s28 = sshll.u32 [#allocation5], 4
      %s29 = int_to_ptr.vmem [resolvable:$true] %s28
      %34 = dma.hbm_to_vmem [thread:$0]  %s4, 512, %s29, [#allocation6], 128, 128, 8
    $region17: #{tpu_custom_call.1} parent=1 // pred_fallthru
      _
    // Predicated region
    $region18: #{tpu_custom_call.1} parent=1 // pred_check
      _
    $region19: #{tpu_custom_call.1} parent=1 // pred_check_branch
      %36 = sbr.rel (0) target = $region21
    $region20: #{tpu_custom_call.1} parent=1 // pred_region
      _
    $region21: #{tpu_custom_call.1} parent=1 // pred_fallthru
      _
    // Predicated region
    $region22: #{tpu_custom_call.1} parent=1 // pred_check
      _
    $region23: #{tpu_custom_call.1} parent=1 // pred_check_branch
      %38 = sbr.rel (0) target = $region25
    $region24: #{tpu_custom_call.1} parent=1 // pred_region
      _
    $region25: #{tpu_custom_call.1} parent=1 // pred_fallthru
      _
    // Predicated region
    $region26: #{tpu_custom_call.1} parent=1 // pred_check
      _
    $region27: #{tpu_custom_call.1} parent=1 // pred_check_branch
      %40 = sbr.rel (0) target = $region29
    $region28: #{tpu_custom_call.1} parent=1 // pred_region
      _
    $region29: #{tpu_custom_call.1} parent=1 // pred_fallthru
      _
    // Predicated region
    $region30: #{tpu_custom_call.1} parent=1 // pred_check
      _
    $region31: #{tpu_custom_call.1} parent=1 // pred_check_branch
      %42 = sbr.rel (0) target = $region33
    $region32: #{tpu_custom_call.1} parent=1 // pred_region
      %43 = dma.done [#allocation6], 512
    $region33: #{tpu_custom_call.1} parent=1 // pred_fallthru
      _
    %s44 = sld [smem:[#allocation3]]
    %s45 = smul.u32 0, 8
    %v46 = vld [vmem:[%s1] sm:$0xff]
    %v47 = vld [vmem:[%s2] sm:$0xff]
    %v48 = vld [vmem:[%s2 + $0x8] sm:$0xff]
    %v49 = vld [vmem:[%s2 + $0x10] sm:$0xff]
    %v50 = vld [vmem:[%s2 + $0x18] sm:$0x3f]
    %v51 = vld [vmem:[%s3] sm:$0x1]
    %v53 = vlaneseq
    %v54 = vshrl.u32 %v53, 7
    %v55 = vsub.s32 0, %v54
    %v56 = vrot.slane %v51, %v55
    %vm58 = vcmask 244736
    %v60 = vsel %vm58, %v46, 0
    %vm62 = vcmask 1045504
    %v64 = vsel %vm62, %v50, 0
    %66 = vmatprep.subr.mxu0 0.0
    %67 = vmatpush1.msra.mxu0 %v47
    %68 = vmatprep.subr.mxu0 0.0
    %69 = vmatpush1.msra.mxu0 %v48
    %70 = vmatprep.subr.mxu0 0.0
    %71 = vmatpush1.msra.mxu0 %v49
    %72 = vmatprep.subr.mxu0 0.0
    %73 = vmatpush1.msra.mxu0 %v64
    %74 = vmatprep.subr.mxu0 0.0
    %75 = vmatpush1.msra.mxu0 0.0
    %76 = vmatprep.subr.mxu0 0.0
    %77 = vmatpush1.msra.mxu0 0.0
    %78 = vmatprep.subr.mxu0 0.0
    %79 = vmatpush1.msra.mxu0 0.0
    %80 = vmatprep.subr.mxu0 0.0
    %81 = vmatpush1.msra.mxu0 0.0
    %82 = vmatprep.subr.mxu0 0.0
    %83 = vmatpush1.msra.mxu0 0.0
    %84 = vmatprep.subr.mxu0 0.0
    %85 = vmatpush1.msra.mxu0 0.0
    %86 = vmatprep.subr.mxu0 0.0
    %87 = vmatpush1.msra.mxu0 0.0
    %88 = vmatprep.subr.mxu0 0.0
    %89 = vmatpush1.msra.mxu0 0.0
    %90 = vmatprep.subr.mxu0 0.0
    %91 = vmatpush1.msra.mxu0 0.0
    %92 = vmatprep.subr.mxu0 0.0
    %93 = vmatpush1.msra.mxu0 0.0
    %94 = vmatprep.subr.mxu0 0.0
    %95 = vmatpush1.msra.mxu0 0.0
    %96 = vmatprep.subr.mxu0 0.0
    %97 = vmatpush1.msra.mxu0 0.0
    %98 = vmatprep.subr.mxu0 0.0
    %99 = vmatpush1.msra.mxu0 0.0
    %100 = vmatprep.subr.mxu0 0.0
    %101 = vmatpush1.msra.mxu0 0.0
    %102 = vmatprep.subr.mxu0 0.0
    %103 = vmatpush1.msra.mxu0 0.0
    %104 = vmatprep.subr.mxu0 0.0
    %105 = vmatpush1.msra.mxu0 0.0
    %106 = vmatprep.subr.mxu0 0.0
    %107 = vmatpush1.msra.mxu0 0.0
    %108 = vmatprep.subr.mxu0 0.0
    %109 = vmatpush1.msra.mxu0 0.0
    %110 = vmatprep.subr.mxu0 0.0
    %111 = vmatpush1.msra.mxu0 0.0
    %112 = vmatprep.subr.mxu0 0.0
    %113 = vmatpush1.msra.mxu0 0.0
    %114 = vmatprep.subr.mxu0 0.0
    %115 = vmatpush1.msra.mxu0 0.0
    %116 = vmatprep.subr.mxu0 0.0
    %117 = vmatpush1.msra.mxu0 0.0
    %118 = vmatprep.subr.mxu0 0.0
    %119 = vmatpush1.msra.mxu0 0.0
    %120 = vmatprep.subr.mxu0 0.0
    %121 = vmatpush1.msra.mxu0 0.0
    %122 = vmatprep.subr.mxu0 0.0
    %123 = vmatpush1.msra.mxu0 0.0
    %124 = vmatprep.subr.mxu0 0.0
    %125 = vmatpush1.msra.mxu0 0.0
    %126 = vmatprep.subr.mxu0 0.0
    %127 = vmatpush1.msra.mxu0 0.0
    %128 = vmatprep.subr.mxu0 0.0
    %129 = vmatpush1.msra.mxu0 0.0
    %130 = vmatprep.mubr.f32.mxu0 0.0
    %131 = vmatmul.mubr.f32.gmra.mrb[0].mxu0 %v60
    %v132 = vpop.f32.mrb[0].mxu0
    %v133 = vadd.f32 %v56, %v132
    %v134 = vpop.f32.mrb[0].mxu0
    %135 = vdwg.mxu0
    %v136 = vmax.f32 %v133, 0.0
    %v137 = vlaneseq
    %v138 = vshrl.u32 %v137, 7
    %v139 = vstv %s45
    %v140 = vadd.s32 %v138, %v139
    %v141 = vlaneseq
    %v142 = vand.u32 %v141, 127
    %v143 = vmul.u32 %v140, 32
    %v144 = vadd.s32 %v143, %v142
    %v145 = vmul.u32 %v144, 2654435761
    %v146 = vstv %s44
    %v147 = vadd.s32 %v145, %v146
    %v148 = vadd.s32 %v147, 1
    %v149 = vshrl.u32 %v148, 16
    %v150 = vxor.u32 %v148, %v149
    %v151 = vmul.u32 %v150, 2246822507
    %v152 = vshrl.u32 %v151, 13
    %v153 = vxor.u32 %v151, %v152
    %v154 = vmul.u32 %v153, 3266489909
    %v155 = vshrl.u32 %v154, 16
    %v156 = vxor.u32 %v154, %v155
    %vm157 = vcmp.ge.u32.totalorder %v156, 858993459
    %v158 = vmul.f32 %v136, 1.25
    %v159 = vsel %vm157, %v158, 0.0
    %v160 = vld [vmem:[#allocation5] sm:$0xff]
    %v161 = vld [vmem:[#allocation5 + $0x8] sm:$0xff]
    %v162 = vld [vmem:[#allocation5 + $0x10] sm:$0xff]
    %v163 = vld [vmem:[#allocation5 + $0x18] sm:$0xff]
    %v164 = vld [vmem:[%s5] sm:$0x1]
    %v166 = vlaneseq
    %v167 = vshrl.u32 %v166, 7
    %v168 = vsub.s32 0, %v167
    %v169 = vrot.slane %v164, %v168
    %vm171 = vcmask 261120
    %v173 = vsel %vm171, %v159, 0
    %175 = vmatprep.subr.mxu0 0.0
    %176 = vmatpush1.msra.mxu0 %v160
    %177 = vmatprep.subr.mxu0 0.0
    %178 = vmatpush1.msra.mxu0 %v161
    %179 = vmatprep.subr.mxu0 0.0
    %180 = vmatpush1.msra.mxu0 %v162
    %181 = vmatprep.subr.mxu0 0.0
    %182 = vmatpush1.msra.mxu0 %v163
    %183 = vmatprep.subr.mxu0 0.0
    %184 = vmatpush1.msra.mxu0 0.0
    %185 = vmatprep.subr.mxu0 0.0
    %186 = vmatpush1.msra.mxu0 0.0
    %187 = vmatprep.subr.mxu0 0.0
    %188 = vmatpush1.msra.mxu0 0.0
    %189 = vmatprep.subr.mxu0 0.0
    %190 = vmatpush1.msra.mxu0 0.0
    %191 = vmatprep.subr.mxu0 0.0
    %192 = vmatpush1.msra.mxu0 0.0
    %193 = vmatprep.subr.mxu0 0.0
    %194 = vmatpush1.msra.mxu0 0.0
    %195 = vmatprep.subr.mxu0 0.0
    %196 = vmatpush1.msra.mxu0 0.0
    %197 = vmatprep.subr.mxu0 0.0
    %198 = vmatpush1.msra.mxu0 0.0
    %199 = vmatprep.subr.mxu0 0.0
    %200 = vmatpush1.msra.mxu0 0.0
    %201 = vmatprep.subr.mxu0 0.0
    %202 = vmatpush1.msra.mxu0 0.0
    %203 = vmatprep.subr.mxu0 0.0
    %204 = vmatpush1.msra.mxu0 0.0
    %205 = vmatprep.subr.mxu0 0.0
    %206 = vmatpush1.msra.mxu0 0.0
    %207 = vmatprep.subr.mxu0 0.0
    %208 = vmatpush1.msra.mxu0 0.0
    %209 = vmatprep.subr.mxu0 0.0
    %210 = vmatpush1.msra.mxu0 0.0
    %211 = vmatprep.subr.mxu0 0.0
    %212 = vmatpush1.msra.mxu0 0.0
    %213 = vmatprep.subr.mxu0 0.0
    %214 = vmatpush1.msra.mxu0 0.0
    %215 = vmatprep.subr.mxu0 0.0
    %216 = vmatpush1.msra.mxu0 0.0
    %217 = vmatprep.subr.mxu0 0.0
    %218 = vmatpush1.msra.mxu0 0.0
    %219 = vmatprep.subr.mxu0 0.0
    %220 = vmatpush1.msra.mxu0 0.0
    %221 = vmatprep.subr.mxu0 0.0
    %222 = vmatpush1.msra.mxu0 0.0
    %223 = vmatprep.subr.mxu0 0.0
    %224 = vmatpush1.msra.mxu0 0.0
    %225 = vmatprep.subr.mxu0 0.0
    %226 = vmatpush1.msra.mxu0 0.0
    %227 = vmatprep.subr.mxu0 0.0
    %228 = vmatpush1.msra.mxu0 0.0
    %229 = vmatprep.subr.mxu0 0.0
    %230 = vmatpush1.msra.mxu0 0.0
    %231 = vmatprep.subr.mxu0 0.0
    %232 = vmatpush1.msra.mxu0 0.0
    %233 = vmatprep.subr.mxu0 0.0
    %234 = vmatpush1.msra.mxu0 0.0
    %235 = vmatprep.subr.mxu0 0.0
    %236 = vmatpush1.msra.mxu0 0.0
    %237 = vmatprep.subr.mxu0 0.0
    %238 = vmatpush1.msra.mxu0 0.0
    %239 = vmatprep.mubr.f32.mxu0 0.0
    %240 = vmatmul.mubr.f32.gmra.mrb[0].mxu0 %v173
    %v241 = vpop.f32.mrb[0].mxu0
    %v242 = vadd.f32 %v169, %v241
    %v243 = vpop.f32.mrb[0].mxu0
    %244 = vdwg.mxu0
    %v245 = vmax.f32 %v242, 0.0
    %v246 = vadd.s32 %v147, 2
    %v247 = vshrl.u32 %v246, 16
    %v248 = vxor.u32 %v246, %v247
    %v249 = vmul.u32 %v248, 2246822507
    %v250 = vshrl.u32 %v249, 13
    %v251 = vxor.u32 %v249, %v250
    %v252 = vmul.u32 %v251, 3266489909
    %v253 = vshrl.u32 %v252, 16
    %v254 = vxor.u32 %v252, %v253
    %vm255 = vcmp.ge.u32.totalorder %v254, 858993459
    %v256 = vmul.f32 %v245, 1.25
    %v257 = vsel %vm255, %v256, 0.0
    %v258 = vld [vmem:[%s6] sm:$0xff]
    %v259 = vld [vmem:[%s6 + $0x8] sm:$0xff]
    %v260 = vld [vmem:[%s6 + $0x10] sm:$0xff]
    %v261 = vld [vmem:[%s6 + $0x18] sm:$0xff]
    %v262 = vld [vmem:[#allocation4] sm:$0x1]
    %v264 = vlaneseq
    %v265 = vshrl.u32 %v264, 7
    %v266 = vsub.s32 0, %v265
    %v267 = vrot.slane %v262, %v266
    %v270 = vsel %vm171, %v257, 0
    %272 = vmatprep.subr.mxu0 0.0
    %273 = vmatpush1.msra.mxu0 %v258
    %274 = vmatprep.subr.mxu0 0.0
    %275 = vmatpush1.msra.mxu0 %v259
    %276 = vmatprep.subr.mxu0 0.0
    %277 = vmatpush1.msra.mxu0 %v260
    %278 = vmatprep.subr.mxu0 0.0
    %279 = vmatpush1.msra.mxu0 %v261
    %280 = vmatprep.subr.mxu0 0.0
    %281 = vmatpush1.msra.mxu0 0.0
    %282 = vmatprep.subr.mxu0 0.0
    %283 = vmatpush1.msra.mxu0 0.0
    %284 = vmatprep.subr.mxu0 0.0
    %285 = vmatpush1.msra.mxu0 0.0
    %286 = vmatprep.subr.mxu0 0.0
    %287 = vmatpush1.msra.mxu0 0.0
    %288 = vmatprep.subr.mxu0 0.0
    %289 = vmatpush1.msra.mxu0 0.0
    %290 = vmatprep.subr.mxu0 0.0
    %291 = vmatpush1.msra.mxu0 0.0
    %292 = vmatprep.subr.mxu0 0.0
    %293 = vmatpush1.msra.mxu0 0.0
    %294 = vmatprep.subr.mxu0 0.0
    %295 = vmatpush1.msra.mxu0 0.0
    %296 = vmatprep.subr.mxu0 0.0
    %297 = vmatpush1.msra.mxu0 0.0
    %298 = vmatprep.subr.mxu0 0.0
    %299 = vmatpush1.msra.mxu0 0.0
    %300 = vmatprep.subr.mxu0 0.0
    %301 = vmatpush1.msra.mxu0 0.0
    %302 = vmatprep.subr.mxu0 0.0
    %303 = vmatpush1.msra.mxu0 0.0
    %304 = vmatprep.subr.mxu0 0.0
    %305 = vmatpush1.msra.mxu0 0.0
    %306 = vmatprep.subr.mxu0 0.0
    %307 = vmatpush1.msra.mxu0 0.0
    %308 = vmatprep.subr.mxu0 0.0
    %309 = vmatpush1.msra.mxu0 0.0
    %310 = vmatprep.subr.mxu0 0.0
    %311 = vmatpush1.msra.mxu0 0.0
    %312 = vmatprep.subr.mxu0 0.0
    %313 = vmatpush1.msra.mxu0 0.0
    %314 = vmatprep.subr.mxu0 0.0
    %315 = vmatpush1.msra.mxu0 0.0
    %316 = vmatprep.subr.mxu0 0.0
    %317 = vmatpush1.msra.mxu0 0.0
    %318 = vmatprep.subr.mxu0 0.0
    %319 = vmatpush1.msra.mxu0 0.0
    %320 = vmatprep.subr.mxu0 0.0
    %321 = vmatpush1.msra.mxu0 0.0
    %322 = vmatprep.subr.mxu0 0.0
    %323 = vmatpush1.msra.mxu0 0.0
    %324 = vmatprep.subr.mxu0 0.0
    %325 = vmatpush1.msra.mxu0 0.0
    %326 = vmatprep.subr.mxu0 0.0
    %327 = vmatpush1.msra.mxu0 0.0
    %328 = vmatprep.subr.mxu0 0.0
    %329 = vmatpush1.msra.mxu0 0.0
    %330 = vmatprep.subr.mxu0 0.0
    %331 = vmatpush1.msra.mxu0 0.0
    %332 = vmatprep.subr.mxu0 0.0
    %333 = vmatpush1.msra.mxu0 0.0
    %334 = vmatprep.subr.mxu0 0.0
    %335 = vmatpush1.msra.mxu0 0.0
    %336 = vmatprep.mubr.f32.mxu0 0.0
    %337 = vmatmul.mubr.f32.gmra.mrb[0].mxu0 %v270
    %v338 = vpop.f32.mrb[0].mxu0
    %v339 = vadd.f32 %v267, %v338
    %v340 = vpop.f32.mrb[0].mxu0
    %341 = vdwg.mxu0
    %v342 = vxor.u32 %v339, 2147483648
    %v343 = vmul.f32 %v342, 1.442695
    %v344 = vpow.pop %v343
    %v345 = vadd.f32 %v344, 1.0
    %v346 = vrcp.pop %v345
    %v347 = vmul.f32 1.0, %v346
    %vm348 = vcmask 7168
    %349 = vst.msk [vmem:[%s8] sm:$0xff] %vm348, %v347
    // Predicated region
    $region34: #{tpu_custom_call.1} parent=1 // pred_check
      _
    $region35: #{tpu_custom_call.1} parent=1 // pred_check_branch
      %351 = sbr.rel (0) target = $region37
    $region36: #{tpu_custom_call.1} parent=1 // pred_region
      _
    $region37: #{tpu_custom_call.1} parent=1 // pred_fallthru
      _
    // Predicated region
    $region38: #{tpu_custom_call.1} parent=1 // pred_check
      _
    $region39: #{tpu_custom_call.1} parent=1 // pred_check_branch
      %353 = sbr.rel (0) target = $region41
    $region40: #{tpu_custom_call.1} parent=1 // pred_region
      _
    $region41: #{tpu_custom_call.1} parent=1 // pred_fallthru
      _
    %354 = vsyncpa [#allocation6], 1

</llo_original>
